<compile_context>
chip_gen: v5e
topology: v5e:2x2
jax: 0.10.0
libtpu: 0.0.40
codegen_flags: <defaults>
</compile_context>

<pallas_src>
import jax
import jax.numpy as jnp
from jax.experimental import pallas as pl
from jax.experimental.pallas import tpu as pltpu

# ---- module hyper-params (blocks * c must equal 24 to match Conv3d(24, 32)) ----
BLOCKS = 3                 # self._steps == self._multiplier
C = 8                      # per-state channel count
PRIMITIVES = ("none", "skip_connect", "conv_1x1x1")
NUM_PRIM = len(PRIMITIVES)
NUM_EDGES = sum(2 + i for i in range(BLOCKS))   # 9 MixedOps
MULTIPLIER = BLOCKS
C_CAT = MULTIPLIER * C     # 24  (concat of last `multiplier` states)
C_OUT = 32                 # conv_end output channels
BN_EPS = 1e-5
LEAKY_SLOPE = 0.2

MAX_TILE_S = 32768         # VMEM-safe on v7x (64 MiB physical / 32 MiB scoped)


def _round_up(x, m):
    return (x + m - 1) // m * m


def _cell_kernel(s0_ref, s1_ref, w_s0_ref, w_s1_ref, bn_shift_ref, out_ref):
    # Whole cell collapsed to: y = W_s1^T @ s1 + W_s0^T @ s0 + shift ; LeakyReLU.
    # (C_OUT, C) @ (C, tile_s) -> (C_OUT, tile_s): lane-dense stores; f32 accumulate.
    y = jnp.dot(w_s1_ref[...], s1_ref[0], preferred_element_type=jnp.float32)
    y = y + jnp.dot(w_s0_ref[...], s0_ref[0], preferred_element_type=jnp.float32)
    y = y + bn_shift_ref[...]                       # (C_OUT, 1) broadcast over lanes
    out_ref[0] = jnp.where(y >= 0, y, LEAKY_SLOPE * y).astype(out_ref.dtype)


def _effective_weights(mix_w, edge_w, conv_end_w, bn_scale, empty_h1):
    """Fold MixedOp DAG + concat + conv_end + BN-scale into one (2C, C_OUT) matrix
    acting on the channel-concat [s1, s0]."""
    mix_w = mix_w.astype(jnp.float32)
    edge_w = edge_w.astype(jnp.float32)
    conv_end_w = conv_end_w.astype(jnp.float32)
    eye = jnp.eye(C, dtype=jnp.float32)
    zero = jnp.zeros((C, C), jnp.float32)
    # T_k: (2C, C) linear map  [s1 | s0]  ->  state_k.
    states = [jnp.concatenate([eye, zero], axis=0),   # state 0 = s1
              jnp.concatenate([zero, eye], axis=0)]   # state 1 = s0
    offset = 0
    for _ in range(BLOCKS):
        t = jnp.zeros((2 * C, C), jnp.float32)
        for j, t_h in enumerate(states):
            if empty_h1 and j == 0:
                continue
            e = offset + j
            # MixedOp edge: 'none' -> 0, 'skip_connect' -> w1*I, 'conv_1x1x1' -> w2*W_e
            m_e = mix_w[e, 1] * eye + mix_w[e, 2] * edge_w[e]
            t = t + t_h @ m_e
        offset += len(states)
        states.append(t)
    t_cat = jnp.concatenate(states[-MULTIPLIER:], axis=1)        # (2C, C_CAT)
    w_eff = (t_cat @ conv_end_w) * bn_scale.reshape(1, C_OUT)    # (2C, C_OUT)
    return w_eff


def _pick_tile(S, N, tile_s):
    """Lane-tile selection: big (>= ~3 MiB/step), 128-aligned, <= 32768, never
    larger than S (so the tail block is the standard Pallas masked partial
    block), and producing >= 2 grid steps when possible (v7x has 2 TCs)."""
    tile_s = max(128, min(int(tile_s), MAX_TILE_S) // 128 * 128)
    if S >= 128:
        tile_s = min(tile_s, (S // 128) * 128)
    else:
        tile_s = S                      # tiny spatial extent: one full block
    num_tiles = pl.cdiv(S, tile_s)
    if N * num_tiles < 2 and S >= 256:
        tile_s = max(128, _round_up(pl.cdiv(S, 2), 128))
        num_tiles = pl.cdiv(S, tile_s)
    return tile_s, num_tiles


def cell_forward(s0, s1, mix_w, edge_w, conv_end_w, bn_scale, bn_shift,
                 *, empty_h1=False, tile_s=16384, out_dtype=None):
    """s0, s1: (N, C, D, H, W) NCDHW.  mix_w: (NUM_EDGES, NUM_PRIM)."""
    N, Cc, D, H, W = s0.shape
    assert Cc == C and s1.shape == s0.shape
    S = D * H * W
    out_dtype = jnp.dtype(out_dtype) if out_dtype is not None else s0.dtype

    # Fold the linear part of the cell into one tiny matrix (runs in XLA, trivial).
    w_eff = _effective_weights(mix_w, edge_w, conv_end_w, bn_scale, empty_h1)
    w_s1_t = jnp.transpose(w_eff[:C]).astype(s0.dtype)       # (C_OUT, C)
    w_s0_t = jnp.transpose(w_eff[C:]).astype(s0.dtype)       # (C_OUT, C)
    bn_shift2 = bn_shift.reshape(C_OUT, 1).astype(jnp.float32)

    # NCDHW -> (N, C, S): pure reshape, native dtype, no pad, no extra HBM pass.
    s0f = s0.reshape(N, C, S)
    s1f = s1.reshape(N, C, S)

    tile_s, num_tiles = _pick_tile(S, N, tile_s)
    grid = (N, num_tiles)

    in_bytes = jnp.dtype(s0.dtype).itemsize
    out_bytes = jnp.dtype(out_dtype).itemsize
    cost = pl.CostEstimate(
        flops=2 * N * S * (2 * C) * C_OUT,
        transcendentals=0,
        bytes_accessed=N * S * (2 * C * in_bytes + C_OUT * out_bytes),
    )

    out = pl.pallas_call(
        _cell_kernel,
        out_shape=jax.ShapeDtypeStruct((N, C_OUT, S), out_dtype),
        grid=grid,
        in_specs=[
            pl.BlockSpec((1, C, tile_s), lambda n, p: (n, 0, p)),     # s0
            pl.BlockSpec((1, C, tile_s), lambda n, p: (n, 0, p)),     # s1
            pl.BlockSpec((C_OUT, C), lambda n, p: (0, 0)),            # W_s0^T
            pl.BlockSpec((C_OUT, C), lambda n, p: (0, 0)),            # W_s1^T
            pl.BlockSpec((C_OUT, 1), lambda n, p: (0, 0)),            # bn shift
        ],
        out_specs=pl.BlockSpec((1, C_OUT, tile_s), lambda n, p: (n, 0, p)),
        compiler_params=pltpu.CompilerParams(
            dimension_semantics=("parallel", "parallel")),
        cost_estimate=cost,
    )(s0f, s1f, w_s0_t, w_s1_t, bn_shift2)

    return out.reshape(N, C_OUT, D, H, W)


def cell_reference(s0, s1, mix_w, edge_w, conv_end_w, bn_scale, bn_shift,
                   empty_h1=False):
    """Pure-JAX reference mirroring the PyTorch forward."""
    s0c = jnp.transpose(s0, (0, 2, 3, 4, 1)).astype(jnp.float32)
    s1c = jnp.transpose(s1, (0, 2, 3, 4, 1)).astype(jnp.float32)

    def mixed(x, e):
        conv = jnp.einsum("ndhwc,cf->ndhwf", x, edge_w[e])
        return mix_w[e, 1] * x + mix_w[e, 2] * conv  # 'none' term is zero

    states = [s1c, s0c]
    offset = 0
    for _ in range(BLOCKS):
        s = jnp.zeros_like(states[0])
        for j, h in enumerate(states):
            if empty_h1 and j == 0:
                continue
            s = s + mixed(h, offset + j)
        offset += len(states)
        states.append(s)
    cat = jnp.concatenate(states[-MULTIPLIER:], axis=-1)
    y = jnp.einsum("ndhwc,co->ndhwo", cat, conv_end_w)
    y = y * bn_scale + bn_shift
    y = jnp.where(y >= 0, y, LEAKY_SLOPE * y)
    return jnp.transpose(y, (0, 4, 1, 2, 3))


if __name__ == "__main__":
    key = jax.random.PRNGKey(0)
    k0, k1, k2, k3, k4 = jax.random.split(key, 5)

    # S = 4*6*7 = 168 is NOT a multiple of 128 -> exercises the Pallas-masked
    # tail block (no wrapper pad / slice anymore).
    N, D, H, W = 2, 4, 6, 7
    s0 = jax.random.normal(k0, (N, C, D, H, W), jnp.float32)
    s1 = jax.random.normal(k1, (N, C, D, H, W), jnp.float32)

    # architecture mixture weights (softmaxed alphas), one row per MixedOp edge
    mix_w = jax.nn.softmax(
        jax.random.normal(k2, (NUM_EDGES, NUM_PRIM), jnp.float32), axis=-1)

    # per-edge 1x1x1 conv weights (bias-free), stored as (C_in, C_out)
    edge_w = jax.random.normal(k3, (NUM_EDGES, C, C), jnp.float32) / jnp.sqrt(C)

    # conv_end: torch Conv3d weight (32, 24, 1, 1, 1) stored as (24, 32) matrix
    conv_end_w = jax.random.normal(k4, (C_CAT, C_OUT), jnp.float32) / jnp.sqrt(C_CAT)

    # BatchNorm3d(32), inference mode, default params/stats -> fused scale/shift
    gamma = jnp.ones((C_OUT,), jnp.float32)
    beta = jnp.zeros((C_OUT,), jnp.float32)
    run_mean = jnp.zeros((C_OUT,), jnp.float32)
    run_var = jnp.ones((C_OUT,), jnp.float32)
    inv = gamma / jnp.sqrt(run_var + BN_EPS)
    bn_scale = inv
    bn_shift = beta - run_mean * inv

    out = cell_forward(s0, s1, mix_w, edge_w, conv_end_w, bn_scale, bn_shift)
    out = jax.block_until_ready(out)

    ref = cell_reference(s0, s1, mix_w, edge_w, conv_end_w, bn_scale, bn_shift)
    assert out.shape == (N, C_OUT, D, H, W)
    assert jnp.allclose(out, ref, rtol=1e-3, atol=1e-3)

    print("KERNEL_OK")
</pallas_src>

<mosaic_0001>
module attributes {stable_mosaic.version = 11 : i64} {
  func.func @_cell_kernel(%arg0: i32, %arg1: i32, %arg2: memref<1x8x128xf32, #tpu.memory_space<vmem>>, %arg3: memref<1x8x128xf32, #tpu.memory_space<vmem>>, %arg4: memref<32x8xf32, #tpu.memory_space<vmem>>, %arg5: memref<32x8xf32, #tpu.memory_space<vmem>>, %arg6: memref<32x1xf32, #tpu.memory_space<vmem>>, %arg7: memref<1x32x128xf32, #tpu.memory_space<vmem>>) attributes {dimension_semantics = [#tpu.dimension_semantics<parallel>, #tpu.dimension_semantics<parallel>], iteration_bounds = array<i64: 2, 2>, scalar_prefetch = 0 : i64, scratch_operands = 0 : i64, tpu.core_type = #tpu.core_type<tc>, window_params = [{transform_indices = @transform_0, window_bounds = array<i64: 1, 8, 128>}, {transform_indices = @transform_1, window_bounds = array<i64: 1, 8, 128>}, {pipeline_mode = #tpu.pipeline_mode<synchronous>, transform_indices = @transform_2, window_bounds = array<i64: 32, 8>}, {pipeline_mode = #tpu.pipeline_mode<synchronous>, transform_indices = @transform_3, window_bounds = array<i64: 32, 8>}, {pipeline_mode = #tpu.pipeline_mode<synchronous>, transform_indices = @transform_4, window_bounds = array<i64: 32, 1>}, {transform_indices = @transform_5, window_bounds = array<i64: 1, 32, 128>}]} {
    %c0 = arith.constant 0 : index
    %c0_0 = arith.constant 0 : index
    %0 = vector.load %arg5[%c0, %c0_0] : memref<32x8xf32, #tpu.memory_space<vmem>>, vector<32x8xf32>
    %c0_1 = arith.constant 0 : index
    %c0_2 = arith.constant 0 : index
    %c0_3 = arith.constant 0 : index
    %1 = vector.load %arg3[%c0_1, %c0_2, %c0_3] : memref<1x8x128xf32, #tpu.memory_space<vmem>>, vector<1x8x128xf32>
    %2 = vector.shape_cast %1 : vector<1x8x128xf32> to vector<8x128xf32>
    %cst = arith.constant dense<0.000000e+00> : vector<32x128xf32>
    %3 = tpu.matmul %0, %2, %cst {dimension_numbers = #tpu.dot_dimension_numbers<[1], [0], [0], [1], [0, 0, 1, 1], [], []>} : vector<32x8xf32>, vector<8x128xf32>, vector<32x128xf32> -> vector<32x128xf32>
    %c0_4 = arith.constant 0 : index
    %c0_5 = arith.constant 0 : index
    %4 = vector.load %arg4[%c0_4, %c0_5] : memref<32x8xf32, #tpu.memory_space<vmem>>, vector<32x8xf32>
    %c0_6 = arith.constant 0 : index
    %c0_7 = arith.constant 0 : index
    %c0_8 = arith.constant 0 : index
    %5 = vector.load %arg2[%c0_6, %c0_7, %c0_8] : memref<1x8x128xf32, #tpu.memory_space<vmem>>, vector<1x8x128xf32>
    %6 = vector.shape_cast %5 : vector<1x8x128xf32> to vector<8x128xf32>
    %cst_9 = arith.constant dense<0.000000e+00> : vector<32x128xf32>
    %7 = tpu.matmul %4, %6, %cst_9 {dimension_numbers = #tpu.dot_dimension_numbers<[1], [0], [0], [1], [0, 0, 1, 1], [], []>} : vector<32x8xf32>, vector<8x128xf32>, vector<32x128xf32> -> vector<32x128xf32>
    %8 = arith.addf %3, %7 : vector<32x128xf32>
    %c0_10 = arith.constant 0 : index
    %c0_11 = arith.constant 0 : index
    %9 = vector.load %arg6[%c0_10, %c0_11] : memref<32x1xf32, #tpu.memory_space<vmem>>, vector<32x1xf32>
    %10 = vector.broadcast %9 : vector<32x1xf32> to vector<32x128xf32>
    %11 = arith.addf %8, %10 : vector<32x128xf32>
    %cst_12 = arith.constant 0.000000e+00 : f32
    %12 = vector.broadcast %cst_12 : f32 to vector<32x128xf32>
    %13 = arith.cmpf oge, %11, %12 : vector<32x128xf32>
    %cst_13 = arith.constant 2.000000e-01 : f32
    %14 = vector.broadcast %cst_13 : f32 to vector<32x128xf32>
    %15 = arith.mulf %14, %11 : vector<32x128xf32>
    %16 = arith.select %13, %11, %15 : vector<32x128xi1>, vector<32x128xf32>
    %c0_14 = arith.constant 0 : index
    %c0_15 = arith.constant 0 : index
    %c0_16 = arith.constant 0 : index
    %17 = vector.load %arg7[%c0_14, %c0_15, %c0_16] : memref<1x32x128xf32, #tpu.memory_space<vmem>>, vector<1x32x128xf32>
    %18 = vector.shape_cast %17 : vector<1x32x128xf32> to vector<32x128xf32>
    %19 = vector.shape_cast %16 : vector<32x128xf32> to vector<1x32x128xf32>
    tpu.vector_store %arg7[%c0_14, %c0_15, %c0_16], %19 {strides = array<i32>} : memref<1x32x128xf32, #tpu.memory_space<vmem>>, vector<1x32x128xf32>,
    return
  }
  func.func @transform_0(%arg0: i32, %arg1: i32) -> (i32, i32, i32) {
    %c0_i32 = arith.constant 0 : i32
    %c0_i32_0 = arith.constant 0 : i32
    return %arg0, %c0_i32, %arg1 : i32, i32, i32
  }
  func.func @transform_1(%arg0: i32, %arg1: i32) -> (i32, i32, i32) {
    %c0_i32 = arith.constant 0 : i32
    %c0_i32_0 = arith.constant 0 : i32
    return %arg0, %c0_i32, %arg1 : i32, i32, i32
  }
  func.func @transform_2(%arg0: i32, %arg1: i32) -> (i32, i32) {
    %c0_i32 = arith.constant 0 : i32
    %c0_i32_0 = arith.constant 0 : i32
    %c0_i32_1 = arith.constant 0 : i32
    return %c0_i32, %c0_i32_0 : i32, i32
  }
  func.func @transform_3(%arg0: i32, %arg1: i32) -> (i32, i32) {
    %c0_i32 = arith.constant 0 : i32
    %c0_i32_0 = arith.constant 0 : i32
    %c0_i32_1 = arith.constant 0 : i32
    return %c0_i32, %c0_i32_0 : i32, i32
  }
  func.func @transform_4(%arg0: i32, %arg1: i32) -> (i32, i32) {
    %c0_i32 = arith.constant 0 : i32
    %c0_i32_0 = arith.constant 0 : i32
    %c0_i32_1 = arith.constant 0 : i32
    return %c0_i32, %c0_i32_0 : i32, i32
  }
  func.func @transform_5(%arg0: i32, %arg1: i32) -> (i32, i32, i32) {
    %c0_i32 = arith.constant 0 : i32
    %c0_i32_0 = arith.constant 0 : i32
    return %arg0, %c0_i32, %arg1 : i32, i32, i32
  }
}

</mosaic_0001>

<llo_original>
// kernel: tpu_custom_call.1
$region0: #{tpu_custom_call.1}
  #allocation0 [shape = 'u32[]', space=smem, size = 0x4, offset = 0x4, fixed_abs, tag = 'smem constant byte address 0x4 - core index']
  #allocation1 [shape = 'u32[72,128]{1,0:T(1,128)}', space=vmem, size = 0x9000, scoped, tag = 'internal scratch']
  %s0 = inlined_call_operand.vmem [shape: f32[2,8,168], index: 0, kind: input, shape index: {}]
  %s1 = inlined_call_operand.vmem [shape: f32[2,8,168], index: 1, kind: input, shape index: {}]
  %s2 = inlined_call_operand.vmem [shape: f32[32,8], index: 2, kind: input, shape index: {}]
  %s3 = inlined_call_operand.vmem [shape: f32[32,8], index: 3, kind: input, shape index: {}]
  %s4 = inlined_call_operand.vmem [shape: f32[32,1], index: 4, kind: input, shape index: {}]
  %s5 = inlined_call_operand.hbm [shape: f32[2,32,168], index: 5, kind: output, shape index: {}]
  %s6 = sld [smem:[#allocation0]]
  $region53: #{tpu_custom_call.1} parent=0
    _
  %s8 = ssub.s32 1, %s6
  %s9 = scalar_select 0, %s8, %s6
  $region1: #{tpu_custom_call.1} parent=0
    #allocation2 [shape = 'u8[32768]{0}', space=vmem, size = 0x8000, scoped, tag = 'output window, operand 0']
    #allocation3 [shape = 's32[2]{0}', space=sflag, size = 0x8, scoped, tag = 'scoped memory for tpu_custom_call.1']
    %10 = vsyncpa [#allocation3], 0
    %s11 = scalar_lea.sflag [#allocation3], 1
    %12 = vsyncpa %s11, 0
    loop: start=0, step=1, limit=6
    $region2: #{tpu_custom_call.1} parent=1 // loop_pre_header
      _
    $region3: #{tpu_custom_call.1} parent=1 // loop_header
      %s14 = sphi 0, %s18
      %p15 = scmp.ge.s32.totalorder %s14, 6
      %s21 = sphi 0, %s33
      %s22 = sphi 0, %s29
      %s23 = sphi 0, %s21
      %s24 = sphi 0, %s22
      %s25 = sphi 0, %s23
      %s26 = sphi 0, %s24
      %s38 = sphi 0, %s40
      %s41 = sphi 0, %s38
      %s42 = sphi 0, %s41
      %s58 = sphi 0, %s42
      %s66 = sphi 0, %s68
      %s69 = sphi 0, %s66
      %s70 = sphi 0, %s69
      %s86 = sphi 0, %s70
      %s90 = sphi 0, %s90
      %s92 = sphi 0, %s90
      %s93 = sphi 0, %s92
      %s107 = sphi 0, %s93
      %s111 = sphi 0, %s111
      %s113 = sphi 0, %s111
      %s114 = sphi 0, %s113
      %s128 = sphi 0, %s114
      %s132 = sphi 0, %s132
      %s134 = sphi 0, %s132
      %s135 = sphi 0, %s134
      %s149 = sphi 0, %s135
      %s157 = sphi 0, %s159
      %s160 = sphi 0, %s157
      %s161 = sphi 0, %s160
      %s177 = sphi 0, %s161
    $region4: #{tpu_custom_call.1} parent=1 // loop_header_branch
      %17 = sbr.rel (%p15) target = $region8
    $region5: #{tpu_custom_call.1} parent=1 // loop_body
      %s19 = ssub.s32 %s14, 1
      %s20 = ssub.s32 %s14, 2
      %s27 = sadd.s32 1, %s22
      %p28 = scmp.ge.s32.totalorder %s27, 2
      %s29 = scalar_select %p28, 0, %s27
      %s30 = sadd.s32 1, %s21
      %s31 = scalar_select %p28, %s30, %s21
      %p32 = scmp.ge.s32.totalorder %s31, 2
      %s33 = scalar_select %p32, 0, %s31
      %s34 = ssub.s32 %s21, %s33
      %s35 = ssub.s32 %s22, %s29
      %s36 = sor.u32 %s34, %s35
      %p37 = scmp.eq.s32.totalorder %s36, 0
      %s39 = sadd.s32 %s38, 1
      %s40 = scalar_select %p37, %s38, %s39
      %p43 = pneg %p37
      %p44 = scmp.eq.s32.totalorder %s14, 3
      %p45 = por %p43, %p44
      %p46 = scmp.ne.s32.totalorder %s38, %s41
      %p47 = scmp.eq.s32.totalorder %s14, 0
      %p48 = por %p46, %p47
      %p49 = scmp.ne.s32.totalorder %s38, %s41
      %p50 = scmp.eq.s32.totalorder %s19, 3
      %p51 = por %p49, %p50
      %p52 = scmp.ne.s32.totalorder %s41, %s42
      %p53 = scmp.eq.s32.totalorder %s19, 0
      %p54 = por %p52, %p53
      %p55 = scmp.ne.s32.totalorder %s41, %s42
      %p56 = scmp.eq.s32.totalorder %s20, 3
      %p57 = por %p55, %p56
      %p59 = scmp.ne.s32.totalorder %s42, %s58
      %p60 = scmp.eq.s32.totalorder %s20, 0
      %p61 = por %p59, %p60
      %s62 = ssub.s32 %s21, %s33
      %s63 = ssub.s32 %s22, %s29
      %s64 = sor.u32 %s62, %s63
      %p65 = scmp.eq.s32.totalorder %s64, 0
      %s67 = sadd.s32 %s66, 1
      %s68 = scalar_select %p65, %s66, %s67
      %p71 = pneg %p65
      %p72 = scmp.eq.s32.totalorder %s14, 3
      %p73 = por %p71, %p72
      %p74 = scmp.ne.s32.totalorder %s66, %s69
      %p75 = scmp.eq.s32.totalorder %s14, 0
      %p76 = por %p74, %p75
      %p77 = scmp.ne.s32.totalorder %s66, %s69
      %p78 = scmp.eq.s32.totalorder %s19, 3
      %p79 = por %p77, %p78
      %p80 = scmp.ne.s32.totalorder %s69, %s70
      %p81 = scmp.eq.s32.totalorder %s19, 0
      %p82 = por %p80, %p81
      %p83 = scmp.ne.s32.totalorder %s69, %s70
      %p84 = scmp.eq.s32.totalorder %s20, 3
      %p85 = por %p83, %p84
      %p87 = scmp.ne.s32.totalorder %s70, %s86
      %p88 = scmp.eq.s32.totalorder %s20, 0
      %p89 = por %p87, %p88
      %s91 = sadd.s32 %s90, 1
      %p94 = scmp.eq.s32.totalorder %s14, 3
      %p95 = scmp.ne.s32.totalorder %s90, %s92
      %p96 = scmp.eq.s32.totalorder %s14, 0
      %p97 = por %p95, %p96
      %p98 = scmp.ne.s32.totalorder %s90, %s92
      %p99 = scmp.eq.s32.totalorder %s19, 3
      %p100 = por %p98, %p99
      %p101 = scmp.ne.s32.totalorder %s92, %s93
      %p102 = scmp.eq.s32.totalorder %s19, 0
      %p103 = por %p101, %p102
      %p104 = scmp.ne.s32.totalorder %s92, %s93
      %p105 = scmp.eq.s32.totalorder %s20, 3
      %p106 = por %p104, %p105
      %p108 = scmp.ne.s32.totalorder %s93, %s107
      %p109 = scmp.eq.s32.totalorder %s20, 0
      %p110 = por %p108, %p109
      %s112 = sadd.s32 %s111, 1
      %p115 = scmp.eq.s32.totalorder %s14, 3
      %p116 = scmp.ne.s32.totalorder %s111, %s113
      %p117 = scmp.eq.s32.totalorder %s14, 0
      %p118 = por %p116, %p117
      %p119 = scmp.ne.s32.totalorder %s111, %s113
      %p120 = scmp.eq.s32.totalorder %s19, 3
      %p121 = por %p119, %p120
      %p122 = scmp.ne.s32.totalorder %s113, %s114
      %p123 = scmp.eq.s32.totalorder %s19, 0
      %p124 = por %p122, %p123
      %p125 = scmp.ne.s32.totalorder %s113, %s114
      %p126 = scmp.eq.s32.totalorder %s20, 3
      %p127 = por %p125, %p126
      %p129 = scmp.ne.s32.totalorder %s114, %s128
      %p130 = scmp.eq.s32.totalorder %s20, 0
      %p131 = por %p129, %p130
      %s133 = sadd.s32 %s132, 1
      %p136 = scmp.eq.s32.totalorder %s14, 3
      %p137 = scmp.ne.s32.totalorder %s132, %s134
      %p138 = scmp.eq.s32.totalorder %s14, 0
      %p139 = por %p137, %p138
      %p140 = scmp.ne.s32.totalorder %s132, %s134
      %p141 = scmp.eq.s32.totalorder %s19, 3
      %p142 = por %p140, %p141
      %p143 = scmp.ne.s32.totalorder %s134, %s135
      %p144 = scmp.eq.s32.totalorder %s19, 0
      %p145 = por %p143, %p144
      %p146 = scmp.ne.s32.totalorder %s134, %s135
      %p147 = scmp.eq.s32.totalorder %s20, 3
      %p148 = por %p146, %p147
      %p150 = scmp.ne.s32.totalorder %s135, %s149
      %p151 = scmp.eq.s32.totalorder %s20, 0
      %p152 = por %p150, %p151
      %s153 = ssub.s32 %s21, %s33
      %s154 = ssub.s32 %s22, %s29
      %s155 = sor.u32 %s153, %s154
      %p156 = scmp.eq.s32.totalorder %s155, 0
      %s158 = sadd.s32 %s157, 1
      %s159 = scalar_select %p156, %s157, %s158
      %p162 = pneg %p156
      %p163 = scmp.eq.s32.totalorder %s14, 3
      %p164 = por %p162, %p163
      %p165 = scmp.ne.s32.totalorder %s157, %s160
      %p166 = scmp.eq.s32.totalorder %s14, 0
      %p167 = por %p165, %p166
      %p168 = scmp.ne.s32.totalorder %s157, %s160
      %p169 = scmp.eq.s32.totalorder %s19, 3
      %p170 = por %p168, %p169
      %p171 = scmp.ne.s32.totalorder %s160, %s161
      %p172 = scmp.eq.s32.totalorder %s19, 0
      %p173 = por %p171, %p172
      %p174 = scmp.ne.s32.totalorder %s160, %s161
      %p175 = scmp.eq.s32.totalorder %s20, 3
      %p176 = por %p174, %p175
      %p178 = scmp.ne.s32.totalorder %s161, %s177
      %p179 = scmp.eq.s32.totalorder %s20, 0
      %p180 = por %p178, %p179
      %p181 = scmp.le.s32.totalorder 1, %s14
      %p182 = scmp.lt.s32.totalorder %s14, 5
      %p183 = pnand %p181, %p182
      %p184 = pneg %p183
      // Predicated region
      $region9: #{tpu_custom_call.1} parent=5 // pred_check
        _
      $region10: #{tpu_custom_call.1} parent=5 // pred_check_branch
        %186 = sbr.rel (%p183) target = $region12
      $region11: #{tpu_custom_call.1} parent=5 // pred_region
        %s187 = ssub.s32 %s14, 1
        // Predicated region
        $region13: #{tpu_custom_call.1} parent=11 // pred_check
          %p188 = pneg %p103
        $region14: #{tpu_custom_call.1} parent=11 // pred_check_branch
          %190 = sbr.rel (%p188) target = $region16
        $region15: #{tpu_custom_call.1} parent=11 // pred_region
          _
        $region16: #{tpu_custom_call.1} parent=11 // pred_fallthru
          _
        // Predicated region
        $region17: #{tpu_custom_call.1} parent=11 // pred_check
          %p191 = pneg %p124
        $region18: #{tpu_custom_call.1} parent=11 // pred_check_branch
          %193 = sbr.rel (%p191) target = $region20
        $region19: #{tpu_custom_call.1} parent=11 // pred_region
          _
        $region20: #{tpu_custom_call.1} parent=11 // pred_fallthru
          _
        // Predicated region
        $region21: #{tpu_custom_call.1} parent=11 // pred_check
          %p194 = pneg %p145
        $region22: #{tpu_custom_call.1} parent=11 // pred_check_branch
          %196 = sbr.rel (%p194) target = $region24
        $region23: #{tpu_custom_call.1} parent=11 // pred_region
          _
        $region24: #{tpu_custom_call.1} parent=11 // pred_fallthru
          _
      $region12: #{tpu_custom_call.1} parent=5 // pred_fallthru
        _
      %p197 = scmp.lt.s32.totalorder %s14, 4
      // Predicated region
      $region25: #{tpu_custom_call.1} parent=5 // pred_check
        %p198 = pneg %p197
      $region26: #{tpu_custom_call.1} parent=5 // pred_check_branch
        %200 = sbr.rel (%p198) target = $region28
      $region27: #{tpu_custom_call.1} parent=5 // pred_region
        // Predicated region
        $region29: #{tpu_custom_call.1} parent=27 // pred_check
          %p201 = pneg %p48
        $region30: #{tpu_custom_call.1} parent=27 // pred_check_branch
          %203 = sbr.rel (%p201) target = $region32
        $region31: #{tpu_custom_call.1} parent=27 // pred_region
          %p204 = scmp.lt.s32.totalorder %s21, 1
          %s205 = scalar_select %p204, %s21, 1
          %p206 = scmp.lt.s32.totalorder %s22, 1
          %s207 = scalar_select %p206, %s22, 1
          %s208 = smul.addr %s205, 2
          %s209 = sadd.s32 %s207, %s208
          %s210 = smul.addr %s209, 8
          %s211 = scalar_lea.vmem %s0, %s210
        $region32: #{tpu_custom_call.1} parent=27 // pred_fallthru
          _
        // Predicated region
        $region33: #{tpu_custom_call.1} parent=27 // pred_check
          %p212 = pneg %p76
        $region34: #{tpu_custom_call.1} parent=27 // pred_check_branch
          %214 = sbr.rel (%p212) target = $region36
        $region35: #{tpu_custom_call.1} parent=27 // pred_region
          %p215 = scmp.lt.s32.totalorder %s21, 1
          %s216 = scalar_select %p215, %s21, 1
          %p217 = scmp.lt.s32.totalorder %s22, 1
          %s218 = scalar_select %p217, %s22, 1
          %s219 = smul.addr %s216, 2
          %s220 = sadd.s32 %s218, %s219
          %s221 = smul.addr %s220, 8
          %s222 = scalar_lea.vmem %s1, %s221
        $region36: #{tpu_custom_call.1} parent=27 // pred_fallthru
          _
      $region28: #{tpu_custom_call.1} parent=5 // pred_fallthru
        _
      %p223 = scmp.le.s32.totalorder 1, %s14
      %p224 = scmp.lt.s32.totalorder %s14, 5
      %p225 = pnand %p223, %p224
      %p226 = pneg %p225
      // Predicated region
      $region37: #{tpu_custom_call.1} parent=5 // pred_check
        _
      $region38: #{tpu_custom_call.1} parent=5 // pred_check_branch
        %228 = sbr.rel (%p225) target = $region40
      $region39: #{tpu_custom_call.1} parent=5 // pred_region
        %s229 = ssub.s32 %s14, 1
        %p230 = scmp.lt.s32.totalorder %s23, 1
        %s231 = scalar_select %p230, %s23, 1
        %p232 = scmp.lt.s32.totalorder %s24, 1
        %s233 = scalar_select %p232, %s24, 1
        %s234 = smul.addr %s231, 2
        %s235 = sadd.s32 %s233, %s234
        %s236 = smul.addr %s235, 8
        %s237 = scalar_lea.vmem %s0, %s236
        %p238 = pneg %p54
        %p239 = pneg %p51
        %p240 = scmp.lt.s32.totalorder %s23, 1
        %s241 = scalar_select %p240, %s23, 1
        %p242 = scmp.lt.s32.totalorder %s24, 1
        %s243 = scalar_select %p242, %s24, 1
        %s244 = smul.addr %s241, 2
        %s245 = sadd.s32 %s243, %s244
        %s246 = smul.addr %s245, 8
        %s247 = scalar_lea.vmem %s1, %s246
        %p248 = pneg %p82
        %p249 = pneg %p79
        %p250 = pneg %p103
        %p251 = pneg %p100
        %p252 = pneg %p124
        %p253 = pneg %p121
        %p254 = pneg %p145
        %p255 = pneg %p142
        %p256 = pneg %p173
        %p257 = pneg %p170
        %s258 = sand.u32 %s160, 1
        %s259 = scalar_lea.sflag [#allocation3], %s258
        %s260 = sand.u32 %s160, 1
        %s261 = smul.addr %s260, 32
        %s262 = scalar_lea.vmem [#allocation2], %s261
        %p263 = scmp.lt.s32.totalorder %s23, 1
        %s264 = scalar_select %p263, %s23, 1
        %p265 = scmp.lt.s32.totalorder %s24, 1
        %s266 = scalar_select %p265, %s24, 1
        %s267 = smul.addr %s264, 2
        %s268 = sadd.s32 %s266, %s267
        %s269 = smul.addr %s268, 8
        %s270 = scalar_lea.vmem %s0, %s269
        %p271 = scmp.lt.s32.totalorder %s23, 1
        %s272 = scalar_select %p271, %s23, 1
        %p273 = scmp.lt.s32.totalorder %s24, 1
        %s274 = scalar_select %p273, %s24, 1
        %s275 = smul.addr %s272, 2
        %s276 = sadd.s32 %s274, %s275
        %s277 = smul.addr %s276, 8
        %s278 = scalar_lea.vmem %s1, %s277
        %v279 = vld [vmem:[%s3] sm:$0xff]
        %v280 = vld [vmem:[%s3 + $0x8] sm:$0xff]
        %v281 = vld [vmem:[%s3 + $0x10] sm:$0xff]
        %v282 = vld [vmem:[%s3 + $0x18] sm:$0xff]
        %v283 = vld [vmem:[%s278] sm:$0xff]
        %v284 = vld [vmem:[%s2] sm:$0xff]
        %v285 = vld [vmem:[%s2 + $0x8] sm:$0xff]
        %v286 = vld [vmem:[%s2 + $0x10] sm:$0xff]
        %v287 = vld [vmem:[%s2 + $0x18] sm:$0xff]
        %v288 = vld [vmem:[%s270] sm:$0xff]
        %vm289 = vcmask 64512
        %v291 = vsel %vm289, %v284, 0
        %v294 = vsel %vm289, %v285, 0
        %v297 = vsel %vm289, %v286, 0
        %v300 = vsel %vm289, %v287, 0
        %302 = vmatpush.msra.mxu0 0.0
        %303 = vmatpush.msra.mxu0 0.0
        %304 = vmatpush.msra.mxu0 0.0
        %305 = vmatpush.msra.mxu0 0.0
        %306 = vmatpush.msra.mxu0 0.0
        %307 = vmatpush.msra.mxu0 0.0
        %308 = vmatpush.msra.mxu0 0.0
        %309 = vmatpush.msra.mxu0 0.0
        %310 = vmatpush.msra.mxu0 0.0
        %311 = vmatpush.msra.mxu0 0.0
        %312 = vmatpush.msra.mxu0 0.0
        %313 = vmatpush.msra.mxu0 0.0
        %314 = vmatpush.msra.mxu0 0.0
        %315 = vmatpush.msra.mxu0 0.0
        %316 = vmatpush.msra.mxu0 0.0
        %317 = vmatpush.msra.mxu0 %v288
        %318 = vmatmul.f32.gmra.mxu0 %v291
        %v319 = vpop.f32.mrf.mxu0
        %v320 = vadd.f32 0.0, %v319
        %321 = vmatmul.f32.gmra.mxu0 %v294
        %v322 = vpop.f32.mrf.mxu0
        %v323 = vadd.f32 0.0, %v322
        %324 = vmatmul.f32.gmra.mxu0 %v297
        %v325 = vpop.f32.mrf.mxu0
        %v326 = vadd.f32 0.0, %v325
        %327 = vmatmul.f32.gmra.mxu0 %v300
        %v328 = vpop.f32.mrf.mxu0
        %v329 = vadd.f32 0.0, %v328
        %330 = vdwg.mxu0
        %v332 = vsel %vm289, %v279, 0
        %v335 = vsel %vm289, %v280, 0
        %v338 = vsel %vm289, %v281, 0
        %v341 = vsel %vm289, %v282, 0
        %343 = vmatpush.msra.mxu0 0.0
        %344 = vmatpush.msra.mxu0 0.0
        %345 = vmatpush.msra.mxu0 0.0
        %346 = vmatpush.msra.mxu0 0.0
        %347 = vmatpush.msra.mxu0 0.0
        %348 = vmatpush.msra.mxu0 0.0
        %349 = vmatpush.msra.mxu0 0.0
        %350 = vmatpush.msra.mxu0 0.0
        %351 = vmatpush.msra.mxu0 0.0
        %352 = vmatpush.msra.mxu0 0.0
        %353 = vmatpush.msra.mxu0 0.0
        %354 = vmatpush.msra.mxu0 0.0
        %355 = vmatpush.msra.mxu0 0.0
        %356 = vmatpush.msra.mxu0 0.0
        %357 = vmatpush.msra.mxu0 0.0
        %358 = vmatpush.msra.mxu0 %v283
        %359 = vmatmul.f32.gmra.mxu0 %v332
        %v360 = vpop.f32.mrf.mxu0
        %v361 = vadd.f32 %v320, %v360
        %362 = vmatmul.f32.gmra.mxu0 %v335
        %v363 = vpop.f32.mrf.mxu0
        %v364 = vadd.f32 %v323, %v363
        %365 = vmatmul.f32.gmra.mxu0 %v338
        %v366 = vpop.f32.mrf.mxu0
        %v367 = vadd.f32 %v326, %v366
        %368 = vmatmul.f32.gmra.mxu0 %v341
        %v369 = vpop.f32.mrf.mxu0
        %v370 = vadd.f32 %v329, %v369
        %371 = vdwg.mxu0
        %v372 = vld [vmem:[%s4] sm:$0xff]
        %v373 = vld [vmem:[%s4 + $0x8] sm:$0xff]
        %v374 = vld [vmem:[%s4 + $0x10] sm:$0xff]
        %v375 = vld [vmem:[%s4 + $0x18] sm:$0xff]
        %377 = vset.pattern.permute.xlu0 0
        %378 = vperm.xlu0 %377, %v372
        %v379 = vpop.permute.xlu0 %378
        %382 = vset.pattern.permute.xlu0 0
        %383 = vperm.xlu0 %382, %v373
        %v384 = vpop.permute.xlu0 %383
        %387 = vset.pattern.permute.xlu0 0
        %388 = vperm.xlu0 %387, %v374
        %v389 = vpop.permute.xlu0 %388
        %392 = vset.pattern.permute.xlu0 0
        %393 = vperm.xlu0 %392, %v375
        %v394 = vpop.permute.xlu0 %393
        %v396 = vadd.f32 %v361, %v379
        %v397 = vadd.f32 %v364, %v384
        %v398 = vadd.f32 %v367, %v389
        %v399 = vadd.f32 %v370, %v394
        %vm400 = vcmp.ge.f32.partialorder %v396, 0.0
        %vm401 = vcmp.ge.f32.partialorder %v397, 0.0
        %vm402 = vcmp.ge.f32.partialorder %v398, 0.0
        %vm403 = vcmp.ge.f32.partialorder %v399, 0.0
        %v404 = vmul.f32 %v396, 0.2
        %v405 = vmul.f32 %v397, 0.2
        %v406 = vmul.f32 %v398, 0.2
        %v407 = vmul.f32 %v399, 0.2
        %v408 = vsel %vm400, %v396, %v404
        %v409 = vsel %vm401, %v397, %v405
        %v410 = vsel %vm402, %v398, %v406
        %v411 = vsel %vm403, %v399, %v407
        %412 = vst [vmem:[%s262] sm:$0xff] %v408
        %413 = vst [vmem:[%s262 + $0x8] sm:$0xff] %v409
        %414 = vst [vmem:[%s262 + $0x10] sm:$0xff] %v410
        %415 = vst [vmem:[%s262 + $0x18] sm:$0xff] %v411
        %s416 = sand.u32 %s160, 1
        %s417 = scalar_lea.sflag [#allocation3], %s416
        %s418 = sand.u32 %s160, 1
        %s419 = smul.addr %s418, 32
        %s420 = scalar_lea.vmem [#allocation2], %s419
        // Predicated region
        $region41: #{tpu_custom_call.1} parent=39 // pred_check
          %p421 = pneg %p170
        $region42: #{tpu_custom_call.1} parent=39 // pred_check_branch
          %423 = sbr.rel (%p421) target = $region44
        $region43: #{tpu_custom_call.1} parent=39 // pred_region
          %425 = vsyncadd %s417, 0
          %s426 = smul.addr %s23, 8
          %s427 = sadd.s32 %s24, %s426
          %s428 = smul.addr %s427, 8
          %s429 = scalar_lea.hbm %s5, %s428
          %s430 = sshll.u32 %s420, 4
          %s431 = int_to_ptr.vmem [resolvable:$true] %s430
          %s432 = sshll.u32 %s429, 4
          %s433 = int_to_ptr.hbm [resolvable:$true] %s432
          %438 = dma.vmem_to_hbm [thread:$0]  %s431, 512, %s433, %s417, 128, 256, 8
        $region44: #{tpu_custom_call.1} parent=39 // pred_fallthru
          _
      $region40: #{tpu_custom_call.1} parent=5 // pred_fallthru
        _
      %p439 = scmp.le.s32.totalorder 2, %s14
      // Predicated region
      $region45: #{tpu_custom_call.1} parent=5 // pred_check
        %p440 = pneg %p439
      $region46: #{tpu_custom_call.1} parent=5 // pred_check_branch
        %442 = sbr.rel (%p440) target = $region48
      $region47: #{tpu_custom_call.1} parent=5 // pred_region
        %s443 = ssub.s32 %s14, 2
        // Predicated region
        $region49: #{tpu_custom_call.1} parent=47 // pred_check
          %p444 = pneg %p176
        $region50: #{tpu_custom_call.1} parent=47 // pred_check_branch
          %446 = sbr.rel (%p444) target = $region52
        $region51: #{tpu_custom_call.1} parent=47 // pred_region
          %s447 = sand.u32 %s161, 1
          %s448 = scalar_lea.sflag [#allocation3], %s447
          %s449 = sand.u32 %s161, 1
          %s450 = smul.addr %s449, 32
          %s451 = scalar_lea.vmem [#allocation2], %s450
          %453 = dma.done %s448, 512
        $region52: #{tpu_custom_call.1} parent=47 // pred_fallthru
          _
      $region48: #{tpu_custom_call.1} parent=5 // pred_fallthru
        _
    $region6: #{tpu_custom_call.1} parent=1 // loop_footer
      %s18 = sadd.s32 1, %s14
    $region7: #{tpu_custom_call.1} parent=1 // loop_footer_branch
      %13 = sbr.rel target = $region3
    $region8: #{tpu_custom_call.1} parent=1 // loop_exit
      _
    %454 = vsyncpa [#allocation3], 1
    %s455 = scalar_lea.sflag [#allocation3], 1
    %456 = vsyncpa %s455, 1

</llo_original>
